<compile_context>
chip_gen: v5e
topology: v5e:2x2
jax: 0.10.0
libtpu: 0.0.40
codegen_flags: <defaults>
</compile_context>

<pallas_src>
import inspect

import jax
import jax.numpy as jnp
from jax.experimental import pallas as pl
from jax.experimental.pallas import tpu as pltpu

NEG_SLOPE = 0.01   # PyTorch nn.LeakyReLU default
_LANE = 128


def _leaky_relu(x):
    # max(x, a*x) == leaky_relu(x) for 0 < a < 1: mul+max instead of cmp+select+mul.
    return jnp.maximum(x, NEG_SLOPE * x)


def _round_up(n, m):
    return ((n + m - 1) // m) * m


def linear3_kernel(x_ref, w1_ref, b1_ref, w2_ref, b2_ref, w3_ref, b3_ref, o_ref):
    # Three MXU matmuls (compute dtype in, f32 accumulate) fused with VPU
    # bias-add + LeakyReLU.  Intermediates never leave VMEM/vregs.
    x = x_ref[...]
    h1 = jnp.dot(x, w1_ref[...], preferred_element_type=jnp.float32)
    h1 = _leaky_relu(h1 + b1_ref[...]).astype(w2_ref.dtype)
    h2 = jnp.dot(h1, w2_ref[...], preferred_element_type=jnp.float32)
    h2 = _leaky_relu(h2 + b2_ref[...]).astype(w3_ref.dtype)
    out = jnp.dot(h2, w3_ref[...], preferred_element_type=jnp.float32) + b3_ref[...]
    o_ref[...] = out.astype(o_ref.dtype)


def _vmem_capacity_bytes():
    try:
        return int(pltpu.get_tpu_info().vmem_capacity_bytes)
    except Exception:
        return 64 << 20   # conservative (v7x-sized) fallback


def _pipeline_mode_supported():
    try:
        return hasattr(pl, "Buffered") and (
            "pipeline_mode" in inspect.signature(pl.BlockSpec).parameters)
    except (TypeError, ValueError):
        return False


def prepare_params(params, compute_dtype=jnp.bfloat16):
    """Pad feature dims to lane multiples and cast ONCE (hoisted out of the hot path)."""
    in_size, hidden = params["w1"].shape
    out_size = params["w3"].shape[1]
    in_p, hid_p, out_p = (_round_up(d, _LANE) for d in (in_size, hidden, out_size))

    def pad_w(w, r, c):
        if w.shape == (r, c) and w.dtype == compute_dtype:
            return w
        return jnp.zeros((r, c), compute_dtype).at[:w.shape[0], :w.shape[1]].set(
            w.astype(compute_dtype))

    def pad_b(b, c):
        b = jnp.asarray(b).reshape(1, -1).astype(jnp.float32)
        if b.shape[1] == c:
            return b
        return jnp.zeros((1, c), jnp.float32).at[:, :b.shape[1]].set(b)

    return dict(
        w1=pad_w(params["w1"], in_p, hid_p), b1=pad_b(params["b1"], hid_p),
        w2=pad_w(params["w2"], hid_p, hid_p), b2=pad_b(params["b2"], hid_p),
        w3=pad_w(params["w3"], hid_p, out_p), b3=pad_b(params["b3"], out_p),
        sizes=(in_size, hidden, out_size),
        padded=(in_p, hid_p, out_p),
        compute_dtype=compute_dtype,
    )


def _build_call(grid, tile_b, in_p, hid_p, out_p, Bp, out_dtype, weight_mode, vmem_limit):
    wkw = {} if weight_mode is None else {"pipeline_mode": weight_mode}

    def resident(shape):
        # Grid-invariant block: stays resident in VMEM across all grid steps.
        return pl.BlockSpec(shape, lambda i: (0, 0), **wkw)

    in_specs = [
        pl.BlockSpec((tile_b, in_p), lambda i: (i, 0)),   # x tile streamed over batch
        resident((in_p, hid_p)),                          # w1
        resident((1, hid_p)),                             # b1 (f32)
        resident((hid_p, hid_p)),                         # w2
        resident((1, hid_p)),                             # b2 (f32)
        resident((hid_p, out_p)),                         # w3
        resident((1, out_p)),                             # b3 (f32)
    ]
    out_spec = pl.BlockSpec((tile_b, out_p), lambda i: (i, 0))

    return pl.pallas_call(
        linear3_kernel,
        out_shape=jax.ShapeDtypeStruct((Bp, out_p), out_dtype),
        grid_spec=pltpu.PrefetchScalarGridSpec(
            num_scalar_prefetch=0,
            grid=grid,
            in_specs=in_specs,
            out_specs=out_spec,
        ),
        compiler_params=pltpu.CompilerParams(
            dimension_semantics=("parallel",),   # batch axis shards across TCs (v7x)
            vmem_limit_bytes=int(vmem_limit),
        ),
    )


def linear3(x, prepared, *, tile_b=None):
    """x: (B, in_size).  prepared: output of prepare_params()."""
    B, in_size = x.shape
    cd = prepared["compute_dtype"]
    in_sz, hidden, out_size = prepared["sizes"]
    in_p, hid_p, out_p = prepared["padded"]
    assert in_size == in_sz, (in_size, in_sz)
    out_dtype = x.dtype

    wbytes = jnp.dtype(cd).itemsize
    obytes = jnp.dtype(out_dtype).itemsize
    sublane = 16 if wbytes == 2 else 8

    # Batch padded only to the sublane pack; any remaining ragged edge block
    # (grid * tile_b > Bp) is handled by Pallas' masked edge-block stores.
    Bp = _round_up(B, sublane)

    # ---- per-generation VMEM budget ------------------------------------------
    vmem_cap = _vmem_capacity_bytes()
    safe_cap = max(vmem_cap - (16 << 20), 24 << 20)     # leave compiler headroom

    weight_bytes = (in_p * hid_p + hid_p * hid_p + hid_p * out_p) * wbytes
    bias_bytes = (2 * hid_p + out_p) * 4
    margin = 4 << 20

    use_single = _pipeline_mode_supported()
    resident_bytes = (weight_bytes + bias_bytes) * (1 if use_single else 2)
    per_row = 2 * (in_p * wbytes + out_p * obytes) + (2 * hid_p + out_p) * 4
    tile_budget = safe_cap - resident_bytes - margin
    if tile_budget < per_row * sublane:
        # TODO(synk): K-tiled inner pipeline (pltpu.emit_pipeline over hid_p with an f32
        # VMEM accumulator) for hidden sizes whose resident weights exceed this chip's VMEM.
        raise NotImplementedError(
            f"hidden={hidden}: resident weights ({resident_bytes / 2**20:.1f} MiB) exceed "
            f"the {vmem_cap / 2**20:.0f} MiB VMEM budget; K-tiled path not implemented")

    # ---- batch tile -----------------------------------------------------------
    if tile_b is None:
        cap = max(sublane, min(512, (tile_budget // per_row) // sublane * sublane))
        # Aim for >=4 grid steps when the batch allows: 2 steps per TC on a v7x
        # megacore keeps each core's DMA/compute pipeline overlapped.
        tgt = _round_up(-(-Bp // 4), sublane) if Bp >= 4 * sublane else Bp
        tile_b = max(sublane, min(cap, tgt, Bp))
    else:
        tile_b = max(sublane, min(_round_up(tile_b, sublane), Bp))
    grid = (pl.cdiv(Bp, tile_b),)

    # ---- VMEM limit matched to the actual weight buffering mode ---------------
    io = 2 * tile_b * (in_p * wbytes + out_p * obytes)
    acts = tile_b * (2 * hid_p + out_p) * 4

    def limit(n_weight_bufs):
        need = (weight_bytes + bias_bytes) * n_weight_bufs + io + acts + margin
        return min(safe_cap, max(need, 16 << 20))

    # ---- input: pad feature dim to a lane multiple, batch to the sublane pack.
    # If nothing needs changing, x is passed straight through (no extra HBM copy).
    if x.dtype == cd and Bp == B and in_p == in_size:
        xp = x
    else:
        xp = jnp.zeros((Bp, in_p), cd).at[:B, :in_size].set(x.astype(cd))

    args = (xp, prepared["w1"], prepared["b1"], prepared["w2"], prepared["b2"],
            prepared["w3"], prepared["b3"])

    if use_single:
        try:
            # Single-buffer the grid-invariant weight/bias blocks (halves resident VMEM).
            out_pad = _build_call(grid, tile_b, in_p, hid_p, out_p, Bp, out_dtype,
                                  pl.Buffered(1), limit(1))(*args)
            return out_pad[:B, :out_size]
        except (pltpu.LoweringException, NotImplementedError, TypeError, ValueError):
            pass  # pipeline_mode unsupported here: fall back to default buffering
    out_pad = _build_call(grid, tile_b, in_p, hid_p, out_p, Bp, out_dtype,
                          None, limit(2))(*args)
    return out_pad[:B, :out_size]


def init_params(key, in_size, out_size, hidden_size=None, dtype=jnp.float32):
    if hidden_size is None:
        hidden_size = max(in_size, out_size)
    ks = jax.random.split(key, 6)

    def lin(kw, kb, fan_in, fan_out):
        bound = 1.0 / jnp.sqrt(fan_in)
        w = jax.random.uniform(kw, (fan_in, fan_out), dtype, -bound, bound)
        b = jax.random.uniform(kb, (1, fan_out), dtype, -bound, bound)
        return w, b

    w1, b1 = lin(ks[0], ks[1], in_size, hidden_size)
    w2, b2 = lin(ks[2], ks[3], hidden_size, hidden_size)
    w3, b3 = lin(ks[4], ks[5], hidden_size, out_size)
    return {"w1": w1, "b1": b1, "w2": w2, "b2": b2, "w3": w3, "b3": b3}


def linear3_ref(x, p):
    lrelu = lambda v: jnp.where(v >= 0, v, NEG_SLOPE * v)
    h1 = lrelu(x @ p["w1"] + p["b1"])
    h2 = lrelu(h1 @ p["w2"] + p["b2"])
    return h2 @ p["w3"] + p["b3"]


if __name__ == "__main__":
    key = jax.random.PRNGKey(0)
    kx, kp, kx2 = jax.random.split(key, 3)

    B, in_size, out_size, hidden = 8, 32, 16, 32
    x = jax.random.normal(kx, (B, in_size), jnp.float32)
    params = init_params(kp, in_size, out_size, hidden)
    ref = linear3_ref(x, params)

    # f32 compute path: tight numerical check of the fused kernel.
    prep_f32 = prepare_params(params, compute_dtype=jnp.float32)
    out_f32 = jax.block_until_ready(linear3(x, prep_f32))
    assert out_f32.shape == (B, out_size), out_f32.shape
    assert jnp.allclose(out_f32, ref, atol=1e-5, rtol=1e-5), \
        float(jnp.max(jnp.abs(out_f32 - ref)))

    # Default bf16-on-MXU path (f32 accumulation): looser bf16 tolerance.
    prep_bf16 = prepare_params(params, compute_dtype=jnp.bfloat16)
    out_bf16 = jax.block_until_ready(linear3(x, prep_bf16))
    assert out_bf16.shape == (B, out_size), out_bf16.shape
    assert jnp.allclose(out_bf16, ref, atol=1e-1, rtol=5e-2), \
        float(jnp.max(jnp.abs(out_bf16 - ref)))

    # Larger, non-power-of-two batch: exercises >=4 batch tiles with a ragged
    # (masked) edge block and reuses the already-prepared weights.
    B2 = 300
    x2 = jax.random.normal(kx2, (B2, in_size), jnp.float32)
    ref2 = linear3_ref(x2, params)
    out2 = jax.block_until_ready(linear3(x2, prep_bf16))
    assert out2.shape == (B2, out_size), out2.shape
    assert jnp.allclose(out2, ref2, atol=1e-1, rtol=5e-2), \
        float(jnp.max(jnp.abs(out2 - ref2)))

    print("KERNEL_OK")
</pallas_src>

<mosaic_0001>
module attributes {stable_mosaic.version = 11 : i64} {
  func.func @linear3_kernel(%arg0: i32, %arg1: memref<8x128xf32, #tpu.memory_space<vmem>>, %arg2: memref<128x128xf32, #tpu.memory_space<vmem>>, %arg3: memref<1x128xf32, #tpu.memory_space<vmem>>, %arg4: memref<128x128xf32, #tpu.memory_space<vmem>>, %arg5: memref<1x128xf32, #tpu.memory_space<vmem>>, %arg6: memref<128x128xf32, #tpu.memory_space<vmem>>, %arg7: memref<1x128xf32, #tpu.memory_space<vmem>>, %arg8: memref<8x128xf32, #tpu.memory_space<vmem>>) attributes {dimension_semantics = [#tpu.dimension_semantics<parallel>], iteration_bounds = array<i64: 1>, scalar_prefetch = 0 : i64, scratch_operands = 0 : i64, tpu.core_type = #tpu.core_type<tc>, window_params = [{transform_indices = @transform_0, window_bounds = array<i64: 8, 128>}, {pipeline_mode = #tpu.pipeline_mode<synchronous>, transform_indices = @transform_1, window_bounds = array<i64: 128, 128>}, {pipeline_mode = #tpu.pipeline_mode<synchronous>, transform_indices = @transform_2, window_bounds = array<i64: 1, 128>}, {pipeline_mode = #tpu.pipeline_mode<synchronous>, transform_indices = @transform_3, window_bounds = array<i64: 128, 128>}, {pipeline_mode = #tpu.pipeline_mode<synchronous>, transform_indices = @transform_4, window_bounds = array<i64: 1, 128>}, {pipeline_mode = #tpu.pipeline_mode<synchronous>, transform_indices = @transform_5, window_bounds = array<i64: 128, 128>}, {pipeline_mode = #tpu.pipeline_mode<synchronous>, transform_indices = @transform_6, window_bounds = array<i64: 1, 128>}, {transform_indices = @transform_7, window_bounds = array<i64: 8, 128>}]} {
    %c0 = arith.constant 0 : index
    %c0_0 = arith.constant 0 : index
    %0 = vector.load %arg1[%c0, %c0_0] : memref<8x128xf32, #tpu.memory_space<vmem>>, vector<8x128xf32>
    %c0_1 = arith.constant 0 : index
    %c0_2 = arith.constant 0 : index
    %1 = vector.load %arg2[%c0_1, %c0_2] : memref<128x128xf32, #tpu.memory_space<vmem>>, vector<128x128xf32>
    %cst = arith.constant dense<0.000000e+00> : vector<8x128xf32>
    %2 = tpu.matmul %0, %1, %cst {dimension_numbers = #tpu.dot_dimension_numbers<[1], [0], [0], [1], [0, 0, 1, 1], [], []>} : vector<8x128xf32>, vector<128x128xf32>, vector<8x128xf32> -> vector<8x128xf32>
    %c0_3 = arith.constant 0 : index
    %c0_4 = arith.constant 0 : index
    %3 = vector.load %arg3[%c0_3, %c0_4] : memref<1x128xf32, #tpu.memory_space<vmem>>, vector<1x128xf32>
    %4 = vector.broadcast %3 : vector<1x128xf32> to vector<8x128xf32>
    %5 = arith.addf %2, %4 : vector<8x128xf32>
    %cst_5 = arith.constant 0.00999999977 : f32
    %6 = vector.broadcast %cst_5 : f32 to vector<8x128xf32>
    %7 = arith.mulf %6, %5 : vector<8x128xf32>
    %8 = arith.maximumf %5, %7 : vector<8x128xf32>
    %c0_6 = arith.constant 0 : index
    %c0_7 = arith.constant 0 : index
    %9 = vector.load %arg4[%c0_6, %c0_7] : memref<128x128xf32, #tpu.memory_space<vmem>>, vector<128x128xf32>
    %cst_8 = arith.constant dense<0.000000e+00> : vector<8x128xf32>
    %10 = tpu.matmul %8, %9, %cst_8 {dimension_numbers = #tpu.dot_dimension_numbers<[1], [0], [0], [1], [0, 0, 1, 1], [], []>} : vector<8x128xf32>, vector<128x128xf32>, vector<8x128xf32> -> vector<8x128xf32>
    %c0_9 = arith.constant 0 : index
    %c0_10 = arith.constant 0 : index
    %11 = vector.load %arg5[%c0_9, %c0_10] : memref<1x128xf32, #tpu.memory_space<vmem>>, vector<1x128xf32>
    %12 = vector.broadcast %11 : vector<1x128xf32> to vector<8x128xf32>
    %13 = arith.addf %10, %12 : vector<8x128xf32>
    %cst_11 = arith.constant 0.00999999977 : f32
    %14 = vector.broadcast %cst_11 : f32 to vector<8x128xf32>
    %15 = arith.mulf %14, %13 : vector<8x128xf32>
    %16 = arith.maximumf %13, %15 : vector<8x128xf32>
    %c0_12 = arith.constant 0 : index
    %c0_13 = arith.constant 0 : index
    %17 = vector.load %arg6[%c0_12, %c0_13] : memref<128x128xf32, #tpu.memory_space<vmem>>, vector<128x128xf32>
    %cst_14 = arith.constant dense<0.000000e+00> : vector<8x128xf32>
    %18 = tpu.matmul %16, %17, %cst_14 {dimension_numbers = #tpu.dot_dimension_numbers<[1], [0], [0], [1], [0, 0, 1, 1], [], []>} : vector<8x128xf32>, vector<128x128xf32>, vector<8x128xf32> -> vector<8x128xf32>
    %c0_15 = arith.constant 0 : index
    %c0_16 = arith.constant 0 : index
    %19 = vector.load %arg7[%c0_15, %c0_16] : memref<1x128xf32, #tpu.memory_space<vmem>>, vector<1x128xf32>
    %20 = vector.broadcast %19 : vector<1x128xf32> to vector<8x128xf32>
    %21 = arith.addf %18, %20 : vector<8x128xf32>
    %c0_17 = arith.constant 0 : index
    %c0_18 = arith.constant 0 : index
    %22 = vector.load %arg8[%c0_17, %c0_18] : memref<8x128xf32, #tpu.memory_space<vmem>>, vector<8x128xf32>
    tpu.vector_store %arg8[%c0_17, %c0_18], %21 {strides = array<i32>} : memref<8x128xf32, #tpu.memory_space<vmem>>, vector<8x128xf32>,
    return
  }
  func.func @transform_0(%arg0: i32) -> (i32, i32) {
    %c0_i32 = arith.constant 0 : i32
    %c0_i32_0 = arith.constant 0 : i32
    return %arg0, %c0_i32 : i32, i32
  }
  func.func @transform_1(%arg0: i32) -> (i32, i32) {
    %c0_i32 = arith.constant 0 : i32
    %c0_i32_0 = arith.constant 0 : i32
    %c0_i32_1 = arith.constant 0 : i32
    return %c0_i32, %c0_i32_0 : i32, i32
  }
  func.func @transform_2(%arg0: i32) -> (i32, i32) {
    %c0_i32 = arith.constant 0 : i32
    %c0_i32_0 = arith.constant 0 : i32
    %c0_i32_1 = arith.constant 0 : i32
    return %c0_i32, %c0_i32_0 : i32, i32
  }
  func.func @transform_3(%arg0: i32) -> (i32, i32) {
    %c0_i32 = arith.constant 0 : i32
    %c0_i32_0 = arith.constant 0 : i32
    %c0_i32_1 = arith.constant 0 : i32
    return %c0_i32, %c0_i32_0 : i32, i32
  }
  func.func @transform_4(%arg0: i32) -> (i32, i32) {
    %c0_i32 = arith.constant 0 : i32
    %c0_i32_0 = arith.constant 0 : i32
    %c0_i32_1 = arith.constant 0 : i32
    return %c0_i32, %c0_i32_0 : i32, i32
  }
  func.func @transform_5(%arg0: i32) -> (i32, i32) {
    %c0_i32 = arith.constant 0 : i32
    %c0_i32_0 = arith.constant 0 : i32
    %c0_i32_1 = arith.constant 0 : i32
    return %c0_i32, %c0_i32_0 : i32, i32
  }
  func.func @transform_6(%arg0: i32) -> (i32, i32) {
    %c0_i32 = arith.constant 0 : i32
    %c0_i32_0 = arith.constant 0 : i32
    %c0_i32_1 = arith.constant 0 : i32
    return %c0_i32, %c0_i32_0 : i32, i32
  }
  func.func @transform_7(%arg0: i32) -> (i32, i32) {
    %c0_i32 = arith.constant 0 : i32
    %c0_i32_0 = arith.constant 0 : i32
    return %arg0, %c0_i32 : i32, i32
  }
}

</mosaic_0001>

<llo_original>
// kernel: tpu_custom_call.1
$region0: #{tpu_custom_call.1}
  #allocation0 [shape = 'u32[]', space=smem, size = 0x4, offset = 0x4, fixed_abs, tag = 'smem constant byte address 0x4 - core index']
  #allocation1 [shape = 'u32[72,128]{1,0:T(1,128)}', space=vmem, size = 0x9000, scoped, tag = 'internal scratch']
  %s0 = inlined_call_operand.hbm [shape: f32[8,128], index: 0, kind: input, shape index: {}]
  %s1 = inlined_call_operand.hbm [shape: f32[128,128], index: 1, kind: input, shape index: {}]
  %s2 = inlined_call_operand.vmem [shape: f32[1,128], index: 2, kind: input, shape index: {}]
  %s3 = inlined_call_operand.hbm [shape: f32[128,128], index: 3, kind: input, shape index: {}]
  %s4 = inlined_call_operand.vmem [shape: f32[1,128], index: 4, kind: input, shape index: {}]
  %s5 = inlined_call_operand.hbm [shape: f32[128,128], index: 5, kind: input, shape index: {}]
  %s6 = inlined_call_operand.vmem [shape: f32[1,128], index: 6, kind: input, shape index: {}]
  %s7 = inlined_call_operand.hbm [shape: f32[8,128], index: 7, kind: output, shape index: {}]
  %s8 = sld [smem:[#allocation0]]
  $region54: #{tpu_custom_call.1} parent=0
    _
  %s10 = ssub.s32 1, %s8
  %s11 = scalar_select 0, %s10, %s8
  $region1: #{tpu_custom_call.1} parent=0
    #allocation2 [shape = 'u8[4096]{0}', space=vmem, size = 0x1000, scoped, tag = 'input window, operand 0, single buffered']
    #allocation3 [shape = 's32[1]{0}', space=sflag, size = 0x4, scoped, tag = 'scoped memory for tpu_custom_call.1']
    #allocation4 [shape = 's32[1]{0}', space=sflag, size = 0x4, scoped, tag = 'scoped memory for tpu_custom_call.1']
    #allocation5 [shape = 'u8[65536]{0}', space=vmem, size = 0x10000, scoped, tag = 'input window, operand 1, single buffered']
    #allocation6 [shape = 's32[1]{0}', space=sflag, size = 0x4, scoped, tag = 'scoped memory for tpu_custom_call.1']
    #allocation7 [shape = 'u8[65536]{0}', space=vmem, size = 0x10000, scoped, tag = 'input window, operand 3, single buffered']
    #allocation8 [shape = 'u8[65536]{0}', space=vmem, size = 0x10000, scoped, tag = 'input window, operand 5, single buffered']
    #allocation9 [shape = 's32[1]{0}', space=sflag, size = 0x4, scoped, tag = 'scoped memory for tpu_custom_call.1']
    #allocation10 [shape = 'u8[4096]{0}', space=vmem, size = 0x1000, scoped, tag = 'output window, operand 0, single buffered']
    %12 = vsyncpa [#allocation3], 0
    %13 = vsyncpa [#allocation6], 0
    %14 = vsyncpa [#allocation9], 0
    %15 = vsyncpa [#allocation4], 0
    // Predicated region
    $region2: #{tpu_custom_call.1} parent=1 // pred_check
      _
    $region3: #{tpu_custom_call.1} parent=1 // pred_check_branch
      %17 = sbr.rel (0) target = $region5
    $region4: #{tpu_custom_call.1} parent=1 // pred_region
      %19 = vsyncadd [#allocation3], 0
      %s21 = sshll.u32 %s0, 4
      %s22 = int_to_ptr.hbm [resolvable:$true] %s21
      %s23 = sshll.u32 [#allocation2], 4
      %s24 = int_to_ptr.vmem [resolvable:$true] %s23
      %26 = dma.hbm_to_vmem [thread:$0]  %s22, 128, %s24, [#allocation3]
    $region5: #{tpu_custom_call.1} parent=1 // pred_fallthru
      _
    // Predicated region
    $region6: #{tpu_custom_call.1} parent=1 // pred_check
      _
    $region7: #{tpu_custom_call.1} parent=1 // pred_check_branch
      %28 = sbr.rel (0) target = $region9
    $region8: #{tpu_custom_call.1} parent=1 // pred_region
      %30 = vsyncadd [#allocation6], 0
      %s31 = sshll.u32 %s1, 4
      %s32 = int_to_ptr.hbm [resolvable:$true] %s31
      %s33 = sshll.u32 [#allocation5], 4
      %s34 = int_to_ptr.vmem [resolvable:$true] %s33
      %39 = dma.hbm_to_vmem [thread:$0]  %s32, 2048, %s34, [#allocation6], 128, 128, 8
    $region9: #{tpu_custom_call.1} parent=1 // pred_fallthru
      _
    // Predicated region
    $region10: #{tpu_custom_call.1} parent=1 // pred_check
      _
    $region11: #{tpu_custom_call.1} parent=1 // pred_check_branch
      %41 = sbr.rel (0) target = $region13
    $region12: #{tpu_custom_call.1} parent=1 // pred_region
      _
    $region13: #{tpu_custom_call.1} parent=1 // pred_fallthru
      _
    // Predicated region
    $region14: #{tpu_custom_call.1} parent=1 // pred_check
      _
    $region15: #{tpu_custom_call.1} parent=1 // pred_check_branch
      %43 = sbr.rel (0) target = $region17
    $region16: #{tpu_custom_call.1} parent=1 // pred_region
      %45 = vsyncadd [#allocation6], 0
      %s46 = sshll.u32 %s3, 4
      %s47 = int_to_ptr.hbm [resolvable:$true] %s46
      %s48 = sshll.u32 [#allocation7], 4
      %s49 = int_to_ptr.vmem [resolvable:$true] %s48
      %54 = dma.hbm_to_vmem [thread:$0]  %s47, 2048, %s49, [#allocation6], 128, 128, 8
    $region17: #{tpu_custom_call.1} parent=1 // pred_fallthru
      _
    // Predicated region
    $region18: #{tpu_custom_call.1} parent=1 // pred_check
      _
    $region19: #{tpu_custom_call.1} parent=1 // pred_check_branch
      %56 = sbr.rel (0) target = $region21
    $region20: #{tpu_custom_call.1} parent=1 // pred_region
      _
    $region21: #{tpu_custom_call.1} parent=1 // pred_fallthru
      _
    // Predicated region
    $region22: #{tpu_custom_call.1} parent=1 // pred_check
      _
    $region23: #{tpu_custom_call.1} parent=1 // pred_check_branch
      %58 = sbr.rel (0) target = $region25
    $region24: #{tpu_custom_call.1} parent=1 // pred_region
      %60 = vsyncadd [#allocation9], 0
      %s61 = sshll.u32 %s5, 4
      %s62 = int_to_ptr.hbm [resolvable:$true] %s61
      %s63 = sshll.u32 [#allocation8], 4
      %s64 = int_to_ptr.vmem [resolvable:$true] %s63
      %69 = dma.hbm_to_vmem [thread:$0]  %s62, 2048, %s64, [#allocation9], 128, 128, 8
    $region25: #{tpu_custom_call.1} parent=1 // pred_fallthru
      _
    // Predicated region
    $region26: #{tpu_custom_call.1} parent=1 // pred_check
      _
    $region27: #{tpu_custom_call.1} parent=1 // pred_check_branch
      %71 = sbr.rel (0) target = $region29
    $region28: #{tpu_custom_call.1} parent=1 // pred_region
      _
    $region29: #{tpu_custom_call.1} parent=1 // pred_fallthru
      _
    // Predicated region
    $region30: #{tpu_custom_call.1} parent=1 // pred_check
      _
    $region31: #{tpu_custom_call.1} parent=1 // pred_check_branch
      %73 = sbr.rel (0) target = $region33
    $region32: #{tpu_custom_call.1} parent=1 // pred_region
      %75 = dma.done [#allocation3], 128
    $region33: #{tpu_custom_call.1} parent=1 // pred_fallthru
      _
    // Predicated region
    $region34: #{tpu_custom_call.1} parent=1 // pred_check
      _
    $region35: #{tpu_custom_call.1} parent=1 // pred_check_branch
      %77 = sbr.rel (0) target = $region37
    $region36: #{tpu_custom_call.1} parent=1 // pred_region
      %79 = dma.done [#allocation6], 2048
    $region37: #{tpu_custom_call.1} parent=1 // pred_fallthru
      _
    // Predicated region
    $region38: #{tpu_custom_call.1} parent=1 // pred_check
      _
    $region39: #{tpu_custom_call.1} parent=1 // pred_check_branch
      %81 = sbr.rel (0) target = $region41
    $region40: #{tpu_custom_call.1} parent=1 // pred_region
      %83 = dma.done [#allocation6], 2048
    $region41: #{tpu_custom_call.1} parent=1 // pred_fallthru
      _
    // Predicated region
    $region42: #{tpu_custom_call.1} parent=1 // pred_check
      _
    $region43: #{tpu_custom_call.1} parent=1 // pred_check_branch
      %85 = sbr.rel (0) target = $region45
    $region44: #{tpu_custom_call.1} parent=1 // pred_region
      %87 = dma.done [#allocation9], 2048
    $region45: #{tpu_custom_call.1} parent=1 // pred_fallthru
      _
    %v88 = vld [vmem:[#allocation2] sm:$0xff]
    %v89 = vld [vmem:[#allocation5] sm:$0xff]
    %v90 = vld [vmem:[#allocation5 + $0x8] sm:$0xff]
    %v91 = vld [vmem:[#allocation5 + $0x10] sm:$0xff]
    %v92 = vld [vmem:[#allocation5 + $0x18] sm:$0xff]
    %v93 = vld [vmem:[#allocation5 + $0x20] sm:$0xff]
    %v94 = vld [vmem:[#allocation5 + $0x28] sm:$0xff]
    %v95 = vld [vmem:[#allocation5 + $0x30] sm:$0xff]
    %v96 = vld [vmem:[#allocation5 + $0x38] sm:$0xff]
    %v97 = vld [vmem:[#allocation5 + $0x40] sm:$0xff]
    %v98 = vld [vmem:[#allocation5 + $0x48] sm:$0xff]
    %v99 = vld [vmem:[#allocation5 + $0x50] sm:$0xff]
    %v100 = vld [vmem:[#allocation5 + $0x58] sm:$0xff]
    %v101 = vld [vmem:[#allocation5 + $0x60] sm:$0xff]
    %v102 = vld [vmem:[#allocation5 + $0x68] sm:$0xff]
    %v103 = vld [vmem:[#allocation5 + $0x70] sm:$0xff]
    %v104 = vld [vmem:[#allocation5 + $0x78] sm:$0xff]
    %v105 = vld [vmem:[%s2] sm:$0x1]
    %v107 = vperm.slane %v105, 0
    %109 = vmatpush.msra.mxu0 %v104
    %110 = vmatpush.msra.mxu0 %v103
    %111 = vmatpush.msra.mxu0 %v102
    %112 = vmatpush.msra.mxu0 %v101
    %113 = vmatpush.msra.mxu0 %v100
    %114 = vmatpush.msra.mxu0 %v99
    %115 = vmatpush.msra.mxu0 %v98
    %116 = vmatpush.msra.mxu0 %v97
    %117 = vmatpush.msra.mxu0 %v96
    %118 = vmatpush.msra.mxu0 %v95
    %119 = vmatpush.msra.mxu0 %v94
    %120 = vmatpush.msra.mxu0 %v93
    %121 = vmatpush.msra.mxu0 %v92
    %122 = vmatpush.msra.mxu0 %v91
    %123 = vmatpush.msra.mxu0 %v90
    %124 = vmatpush.msra.mxu0 %v89
    %125 = vmatmul.f32.gmra.mxu0 %v88
    %v126 = vpop.f32.mrf.mxu0
    %v127 = vadd.f32 %v107, %v126
    %128 = vdwg.mxu0
    %v129 = vmul.f32 %v127, 0.01
    %v130 = vmax.f32 %v127, %v129
    %v131 = vld [vmem:[#allocation7] sm:$0xff]
    %v132 = vld [vmem:[#allocation7 + $0x8] sm:$0xff]
    %v133 = vld [vmem:[#allocation7 + $0x10] sm:$0xff]
    %v134 = vld [vmem:[#allocation7 + $0x18] sm:$0xff]
    %v135 = vld [vmem:[#allocation7 + $0x20] sm:$0xff]
    %v136 = vld [vmem:[#allocation7 + $0x28] sm:$0xff]
    %v137 = vld [vmem:[#allocation7 + $0x30] sm:$0xff]
    %v138 = vld [vmem:[#allocation7 + $0x38] sm:$0xff]
    %v139 = vld [vmem:[#allocation7 + $0x40] sm:$0xff]
    %v140 = vld [vmem:[#allocation7 + $0x48] sm:$0xff]
    %v141 = vld [vmem:[#allocation7 + $0x50] sm:$0xff]
    %v142 = vld [vmem:[#allocation7 + $0x58] sm:$0xff]
    %v143 = vld [vmem:[#allocation7 + $0x60] sm:$0xff]
    %v144 = vld [vmem:[#allocation7 + $0x68] sm:$0xff]
    %v145 = vld [vmem:[#allocation7 + $0x70] sm:$0xff]
    %v146 = vld [vmem:[#allocation7 + $0x78] sm:$0xff]
    %v147 = vld [vmem:[%s4] sm:$0x1]
    %v149 = vperm.slane %v147, 0
    %151 = vmatpush.msra.mxu0 %v146
    %152 = vmatpush.msra.mxu0 %v145
    %153 = vmatpush.msra.mxu0 %v144
    %154 = vmatpush.msra.mxu0 %v143
    %155 = vmatpush.msra.mxu0 %v142
    %156 = vmatpush.msra.mxu0 %v141
    %157 = vmatpush.msra.mxu0 %v140
    %158 = vmatpush.msra.mxu0 %v139
    %159 = vmatpush.msra.mxu0 %v138
    %160 = vmatpush.msra.mxu0 %v137
    %161 = vmatpush.msra.mxu0 %v136
    %162 = vmatpush.msra.mxu0 %v135
    %163 = vmatpush.msra.mxu0 %v134
    %164 = vmatpush.msra.mxu0 %v133
    %165 = vmatpush.msra.mxu0 %v132
    %166 = vmatpush.msra.mxu0 %v131
    %167 = vmatmul.f32.gmra.mxu0 %v130
    %v168 = vpop.f32.mrf.mxu0
    %v169 = vadd.f32 %v149, %v168
    %170 = vdwg.mxu0
    %v171 = vmul.f32 %v169, 0.01
    %v172 = vmax.f32 %v169, %v171
    %v173 = vld [vmem:[#allocation8] sm:$0xff]
    %v174 = vld [vmem:[#allocation8 + $0x8] sm:$0xff]
    %v175 = vld [vmem:[#allocation8 + $0x10] sm:$0xff]
    %v176 = vld [vmem:[#allocation8 + $0x18] sm:$0xff]
    %v177 = vld [vmem:[#allocation8 + $0x20] sm:$0xff]
    %v178 = vld [vmem:[#allocation8 + $0x28] sm:$0xff]
    %v179 = vld [vmem:[#allocation8 + $0x30] sm:$0xff]
    %v180 = vld [vmem:[#allocation8 + $0x38] sm:$0xff]
    %v181 = vld [vmem:[#allocation8 + $0x40] sm:$0xff]
    %v182 = vld [vmem:[#allocation8 + $0x48] sm:$0xff]
    %v183 = vld [vmem:[#allocation8 + $0x50] sm:$0xff]
    %v184 = vld [vmem:[#allocation8 + $0x58] sm:$0xff]
    %v185 = vld [vmem:[#allocation8 + $0x60] sm:$0xff]
    %v186 = vld [vmem:[#allocation8 + $0x68] sm:$0xff]
    %v187 = vld [vmem:[#allocation8 + $0x70] sm:$0xff]
    %v188 = vld [vmem:[#allocation8 + $0x78] sm:$0xff]
    %v189 = vld [vmem:[%s6] sm:$0x1]
    %v191 = vperm.slane %v189, 0
    %193 = vmatpush.msra.mxu0 %v188
    %194 = vmatpush.msra.mxu0 %v187
    %195 = vmatpush.msra.mxu0 %v186
    %196 = vmatpush.msra.mxu0 %v185
    %197 = vmatpush.msra.mxu0 %v184
    %198 = vmatpush.msra.mxu0 %v183
    %199 = vmatpush.msra.mxu0 %v182
    %200 = vmatpush.msra.mxu0 %v181
    %201 = vmatpush.msra.mxu0 %v180
    %202 = vmatpush.msra.mxu0 %v179
    %203 = vmatpush.msra.mxu0 %v178
    %204 = vmatpush.msra.mxu0 %v177
    %205 = vmatpush.msra.mxu0 %v176
    %206 = vmatpush.msra.mxu0 %v175
    %207 = vmatpush.msra.mxu0 %v174
    %208 = vmatpush.msra.mxu0 %v173
    %209 = vmatmul.f32.gmra.mxu0 %v172
    %v210 = vpop.f32.mrf.mxu0
    %v211 = vadd.f32 %v191, %v210
    %212 = vdwg.mxu0
    %213 = vst [vmem:[#allocation10] sm:$0xff] %v211
    // Predicated region
    $region46: #{tpu_custom_call.1} parent=1 // pred_check
      _
    $region47: #{tpu_custom_call.1} parent=1 // pred_check_branch
      %215 = sbr.rel (0) target = $region49
    $region48: #{tpu_custom_call.1} parent=1 // pred_region
      %217 = vsyncadd [#allocation4], 0
      %s219 = sshll.u32 [#allocation10], 4
      %s220 = int_to_ptr.vmem [resolvable:$true] %s219
      %s221 = sshll.u32 %s7, 4
      %s222 = int_to_ptr.hbm [resolvable:$true] %s221
      %224 = dma.vmem_to_hbm [thread:$0]  %s220, 128, %s222, [#allocation4]
    $region49: #{tpu_custom_call.1} parent=1 // pred_fallthru
      _
    // Predicated region
    $region50: #{tpu_custom_call.1} parent=1 // pred_check
      _
    $region51: #{tpu_custom_call.1} parent=1 // pred_check_branch
      %226 = sbr.rel (0) target = $region53
    $region52: #{tpu_custom_call.1} parent=1 // pred_region
      %228 = dma.done [#allocation4], 128
    $region53: #{tpu_custom_call.1} parent=1 // pred_fallthru
      _
    %229 = vsyncpa [#allocation3], 1
    %230 = vsyncpa [#allocation6], 1
    %231 = vsyncpa [#allocation9], 1
    %232 = vsyncpa [#allocation4], 1

</llo_original>
